<compile_context>
chip_gen: v7x
topology: tpu7x:2x2x1
jax: 0.10.0
libtpu: 0.0.40
codegen_flags: <defaults>
</compile_context>

<pallas_src>
import functools

import jax
import jax.numpy as jnp
import numpy as np
from jax import lax
from jax.experimental import pallas as pl
from jax.experimental.pallas import tpu as pltpu

_LANE = 128  # lane-dense padding target for the fused weight slab


def _hopfield_kernel(x_ref, w_ref, b_ref, out_ref, *, hidden_size, out_cols):
    """One grid step = one independent Hopfield group.

    x_ref   : (B, D)         bf16  flattened input for this group
    w_ref   : (D, SLAB)      bf16  [W_Q*beta/sqrt(H) | W_K | W_V@W_fc | 0-pad]
    b_ref   : (1, out_cols)  f32   fc bias (zero-padded)
    out_ref : (B, out_cols)  f32   logits (wrapper slices [:, :num_classes])
    """
    H = hidden_size
    x = x_ref[...]

    # Single fused projection (bf16 operands, f32 accumulation on the MXU).
    qkv = jnp.dot(x, w_ref[...], preferred_element_type=jnp.float32)
    q = qkv[:, :H]                       # beta/sqrt(H) already folded in
    k = qkv[:, H:2 * H]
    vfc = qkv[:, 2 * H:2 * H + out_cols]  # x @ (W_V @ W_fc), zero-padded cols

    # energy = (scaled Q) @ K^T; softmax over last axis (the batch axis).
    energy = lax.dot_general(q, k,
                             dimension_numbers=(((1,), (1,)), ((), ())),
                             preferred_element_type=jnp.float32)
    m = jnp.max(energy, axis=-1, keepdims=True)
    p = jnp.exp(energy - m)
    denom = jnp.sum(p, axis=-1, keepdims=True)
    attn = p * pl.reciprocal(denom, approx=True)   # denom >= 1, EUP slot

    # Attention readout straight into (pre-folded) classifier columns.
    logits = jnp.dot(attn, vfc, preferred_element_type=jnp.float32) + b_ref[...]
    out_ref[...] = logits.astype(out_ref.dtype)


def prepare_hopfield_params(params, *, beta=1.0):
    """One-time parameter prep (do NOT call per forward)."""
    wq, wk, wv, wfc, bfc = params
    D, H = wq.shape
    C = wfc.shape[1]

    slab = max(_LANE, pl.cdiv(2 * H + C, _LANE) * _LANE)
    out_cols = slab - 2 * H

    scale = beta / (float(H) ** 0.5)
    wvc = wv.astype(jnp.float32) @ wfc.astype(jnp.float32)      # (D, C)

    w_fused = jnp.zeros((D, slab), jnp.float32)
    w_fused = w_fused.at[:, :H].set(wq.astype(jnp.float32) * scale)
    w_fused = w_fused.at[:, H:2 * H].set(wk.astype(jnp.float32))
    w_fused = w_fused.at[:, 2 * H:2 * H + C].set(wvc)
    w_fused = w_fused.astype(jnp.bfloat16)

    b_pad = jnp.zeros((1, out_cols), jnp.float32).at[0, :C].set(
        bfc.astype(jnp.float32))

    meta = dict(input_size=int(D), hidden_size=int(H), num_classes=int(C),
                slab=int(slab), out_cols=int(out_cols))
    return (w_fused, b_pad), meta


def hopfield_forward(x, prepared, meta):
    """Forward pass. x is (B, C, H, W) or (G, B, C, H, W) for G groups."""
    w_fused, b_pad = prepared
    D = meta["input_size"]
    H = meta["hidden_size"]
    C = meta["num_classes"]
    slab = meta["slab"]
    out_cols = meta["out_cols"]

    single = (x.ndim == 4)
    if single:
        x = x[None]                                   # (1, B, C, H, W)
    G, B = x.shape[0], x.shape[1]
    x_flat = x.reshape(G, B, -1).astype(jnp.bfloat16)
    assert x_flat.shape[2] == D

    kernel = functools.partial(_hopfield_kernel,
                               hidden_size=H, out_cols=out_cols)

    flops = G * (2 * B * D * slab + 2 * B * B * H + 2 * B * B * out_cols)
    bytes_accessed = (x_flat.size * 2 + w_fused.size * 2 + b_pad.size * 4
                      + G * B * out_cols * 4)

    out_pad = pl.pallas_call(
        kernel,
        out_shape=jax.ShapeDtypeStruct((G, B, out_cols), jnp.float32),
        grid=(G,),
        in_specs=[
            # per-group activations (pipelined across the grid)
            pl.BlockSpec((None, B, D), lambda g: (g, 0, 0)),
            # weights/bias: constant index_map -> fetched once, VMEM-resident
            pl.BlockSpec((D, slab), lambda g: (0, 0)),
            pl.BlockSpec((1, out_cols), lambda g: (0, 0)),
        ],
        out_specs=pl.BlockSpec((None, B, out_cols), lambda g: (g, 0, 0)),
        compiler_params=pltpu.CompilerParams(
            dimension_semantics=("parallel",)),
        cost_estimate=pl.CostEstimate(flops=flops,
                                      transcendentals=G * B * B,
                                      bytes_accessed=bytes_accessed),
    )(x_flat, w_fused, b_pad)

    logits = out_pad[..., :C]
    return logits[0] if single else logits


def make_hopfield_forward(params, *, beta=1.0):
    """Prepare fused/padded weights once and return a jitted forward."""
    prepared, meta = prepare_hopfield_params(params, beta=beta)
    return jax.jit(lambda x: hopfield_forward(x, prepared, meta))


def _reference(x_nchw, params, *, beta=1.0):
    """Pure-JAX f32 reference matching the PyTorch forward semantics."""
    wq, wk, wv, wfc, bfc = params
    H = wq.shape[1]
    x = x_nchw.reshape(x_nchw.shape[0], -1).astype(jnp.float32)
    q, k, v = x @ wq, x @ wk, x @ wv
    energy = (q @ k.T) / (H ** 0.5)
    attn = jax.nn.softmax(energy * beta, axis=-1)
    out = attn @ v
    return out @ wfc + bfc[None, :]


def _init_params(key, input_size, hidden_size, num_classes):
    """Deterministic synthetic init (PyTorch-style uniform bounds)."""
    k1, k2, k3, k4, k5 = jax.random.split(key, 5)
    lim_in = 1.0 / (input_size ** 0.5)
    lim_h = 1.0 / (hidden_size ** 0.5)
    wq = jax.random.uniform(k1, (input_size, hidden_size), jnp.float32,
                            -lim_in, lim_in)
    wk = jax.random.uniform(k2, (input_size, hidden_size), jnp.float32,
                            -lim_in, lim_in)
    wv = jax.random.uniform(k3, (input_size, hidden_size), jnp.float32,
                            -lim_in, lim_in)
    wfc = jax.random.uniform(k4, (hidden_size, num_classes), jnp.float32,
                             -lim_h, lim_h)
    bfc = jax.random.uniform(k5, (num_classes,), jnp.float32, -lim_h, lim_h)
    return wq, wk, wv, wfc, bfc


if __name__ == "__main__":
    # Config implied by the module's forward:
    #   input_size = C*H*W = 4*16*16 = 1024, hidden_size = 32, num_classes = 10
    B, C_in, HW = 8, 4, 16
    input_size = C_in * HW * HW
    hidden_size = 32
    num_classes = 10
    beta = 1.0

    key = jax.random.PRNGKey(0)
    kx, kp = jax.random.split(key)
    x = jax.random.normal(kx, (B, C_in, HW, HW), jnp.float32)
    params = _init_params(kp, input_size, hidden_size, num_classes)

    fwd = make_hopfield_forward(params, beta=beta)  # param prep happens once

    # Single forward (matches the PyTorch module's call signature).
    out = jax.block_until_ready(fwd(x))
    ref = _reference(x, params, beta=beta)
    # bf16 operands + folded W_V@W_fc + approx reciprocal -> loosened tolerance.
    np.testing.assert_allclose(np.asarray(out), np.asarray(ref),
                               rtol=3e-2, atol=3e-2)

    # Grouped forward: G independent batches on a pipelined "parallel" grid
    # (each group keeps its own B x B softmax; engages v7x's second TC).
    G = 4
    xg = jax.random.normal(jax.random.PRNGKey(1), (G, B, C_in, HW, HW),
                           jnp.float32)
    outg = jax.block_until_ready(fwd(xg))
    refg = jnp.stack([_reference(xg[g], params, beta=beta) for g in range(G)])
    np.testing.assert_allclose(np.asarray(outg), np.asarray(refg),
                               rtol=3e-2, atol=3e-2)

    print("KERNEL_OK")
</pallas_src>

<mosaic_0001>
module attributes {stable_mosaic.version = 11 : i64} {
  func.func @_hopfield_kernel(%arg0: i32, %arg1: memref<1x8x1024xbf16, #tpu.memory_space<vmem>>, %arg2: memref<1024x128xbf16, #tpu.memory_space<vmem>>, %arg3: memref<1x64xf32, #tpu.memory_space<vmem>>, %arg4: memref<1x8x64xf32, #tpu.memory_space<vmem>>) attributes {dimension_semantics = [#tpu.dimension_semantics<parallel>], iteration_bounds = array<i64: 1>, scalar_prefetch = 0 : i64, scratch_operands = 0 : i64, tpu.core_type = #tpu.core_type<tc>, window_params = [{transform_indices = @transform_0, window_bounds = array<i64: 1, 8, 1024>}, {pipeline_mode = #tpu.pipeline_mode<synchronous>, transform_indices = @transform_1, window_bounds = array<i64: 1024, 128>}, {pipeline_mode = #tpu.pipeline_mode<synchronous>, transform_indices = @transform_2, window_bounds = array<i64: 1, 64>}, {transform_indices = @transform_3, window_bounds = array<i64: 1, 8, 64>}]} {
    %c0 = arith.constant 0 : index
    %c0_0 = arith.constant 0 : index
    %c0_1 = arith.constant 0 : index
    %0 = vector.load %arg1[%c0, %c0_0, %c0_1] : memref<1x8x1024xbf16, #tpu.memory_space<vmem>>, vector<1x8x1024xbf16>
    %1 = vector.shape_cast %0 : vector<1x8x1024xbf16> to vector<8x1024xbf16>
    %c0_2 = arith.constant 0 : index
    %c0_3 = arith.constant 0 : index
    %2 = vector.load %arg2[%c0_2, %c0_3] : memref<1024x128xbf16, #tpu.memory_space<vmem>>, vector<1024x128xbf16>
    %cst = arith.constant dense<0.000000e+00> : vector<8x128xf32>
    %3 = tpu.matmul %1, %2, %cst {dimension_numbers = #tpu.dot_dimension_numbers<[1], [0], [0], [1], [0, 0, 1, 1], [], []>} : vector<8x1024xbf16>, vector<1024x128xbf16>, vector<8x128xf32> -> vector<8x128xf32>
    %4 = vector.extract_strided_slice %3 {offsets = [0, 0], sizes = [8, 32], strides = [1, 1]} : vector<8x128xf32> to vector<8x32xf32>
    %5 = vector.extract_strided_slice %3 {offsets = [0, 32], sizes = [8, 32], strides = [1, 1]} : vector<8x128xf32> to vector<8x32xf32>
    %6 = vector.extract_strided_slice %3 {offsets = [0, 64], sizes = [8, 64], strides = [1, 1]} : vector<8x128xf32> to vector<8x64xf32>
    %cst_4 = arith.constant dense<0.000000e+00> : vector<8x8xf32>
    %7 = tpu.matmul %4, %5, %cst_4 {dimension_numbers = #tpu.dot_dimension_numbers<[1], [1], [0], [0], [0, 0, 1, 0], [], []>} : vector<8x32xf32>, vector<8x32xf32>, vector<8x8xf32> -> vector<8x8xf32>
    %cst_5 = arith.constant dense<0xFF800000> : vector<8xf32>
    %8 = vector.multi_reduction <maximumf>, %7, %cst_5 [1] : vector<8x8xf32> to vector<8xf32>
    %9 = vector.shape_cast %8 : vector<8xf32> to vector<8x1xf32>
    %10 = vector.broadcast %9 : vector<8x1xf32> to vector<8x8xf32>
    %11 = arith.subf %7, %10 : vector<8x8xf32>
    %12 = math.exp %11 : vector<8x8xf32>
    %cst_6 = arith.constant dense<0.000000e+00> : vector<8xf32>
    %13 = vector.multi_reduction <add>, %12, %cst_6 [1] : vector<8x8xf32> to vector<8xf32>
    %14 = vector.shape_cast %13 : vector<8xf32> to vector<8x1xf32>
    %15 = tpu.reciprocal %14 {approx = true} : vector<8x1xf32> -> vector<8x1xf32>
    %16 = vector.broadcast %15 : vector<8x1xf32> to vector<8x8xf32>
    %17 = arith.mulf %12, %16 : vector<8x8xf32>
    %cst_7 = arith.constant dense<0.000000e+00> : vector<8x64xf32>
    %18 = tpu.matmul %17, %6, %cst_7 {dimension_numbers = #tpu.dot_dimension_numbers<[1], [0], [0], [1], [0, 0, 1, 1], [], []>} : vector<8x8xf32>, vector<8x64xf32>, vector<8x64xf32> -> vector<8x64xf32>
    %c0_8 = arith.constant 0 : index
    %c0_9 = arith.constant 0 : index
    %19 = vector.load %arg3[%c0_8, %c0_9] : memref<1x64xf32, #tpu.memory_space<vmem>>, vector<1x64xf32>
    %20 = vector.broadcast %19 : vector<1x64xf32> to vector<8x64xf32>
    %21 = arith.addf %18, %20 : vector<8x64xf32>
    %c0_10 = arith.constant 0 : index
    %c0_11 = arith.constant 0 : index
    %c0_12 = arith.constant 0 : index
    %22 = vector.load %arg4[%c0_10, %c0_11, %c0_12] : memref<1x8x64xf32, #tpu.memory_space<vmem>>, vector<1x8x64xf32>
    %23 = vector.shape_cast %22 : vector<1x8x64xf32> to vector<8x64xf32>
    %24 = vector.shape_cast %21 : vector<8x64xf32> to vector<1x8x64xf32>
    tpu.vector_store %arg4[%c0_10, %c0_11, %c0_12], %24 {strides = array<i32>} : memref<1x8x64xf32, #tpu.memory_space<vmem>>, vector<1x8x64xf32>,
    return
  }
  func.func @transform_0(%arg0: i32) -> (i32, i32, i32) {
    %c0_i32 = arith.constant 0 : i32
    %c0_i32_0 = arith.constant 0 : i32
    %c0_i32_1 = arith.constant 0 : i32
    return %arg0, %c0_i32, %c0_i32_0 : i32, i32, i32
  }
  func.func @transform_1(%arg0: i32) -> (i32, i32) {
    %c0_i32 = arith.constant 0 : i32
    %c0_i32_0 = arith.constant 0 : i32
    %c0_i32_1 = arith.constant 0 : i32
    return %c0_i32, %c0_i32_0 : i32, i32
  }
  func.func @transform_2(%arg0: i32) -> (i32, i32) {
    %c0_i32 = arith.constant 0 : i32
    %c0_i32_0 = arith.constant 0 : i32
    %c0_i32_1 = arith.constant 0 : i32
    return %c0_i32, %c0_i32_0 : i32, i32
  }
  func.func @transform_3(%arg0: i32) -> (i32, i32, i32) {
    %c0_i32 = arith.constant 0 : i32
    %c0_i32_0 = arith.constant 0 : i32
    %c0_i32_1 = arith.constant 0 : i32
    return %arg0, %c0_i32, %c0_i32_0 : i32, i32, i32
  }
}

</mosaic_0001>

<llo_original>
// kernel: _lambda_.1
$region0: #{_lambda_.1}
  #allocation0 [shape = 'u32[]', space=smem, size = 0x4, offset = 0x4, fixed_abs, tag = 'smem constant byte address 0x4 - core index']
  #allocation1 [shape = 'u32[144,128]{1,0:T(1,128)}', space=vmem, size = 0x12000, scoped, tag = 'internal scratch']
  %s0 = inlined_call_operand.vmem [shape: bf16[1,8,1024], index: 0, kind: input, shape index: {}]
  %s1 = inlined_call_operand.vmem [shape: bf16[1024,128], index: 1, kind: input, shape index: {}]
  %s2 = inlined_call_operand.vmem [shape: f32[1,64], index: 2, kind: input, shape index: {}]
  %s3 = inlined_call_operand.vmem [shape: f32[1,8,64], index: 3, kind: output, shape index: {}]
  %s4 = sld [smem:[#allocation0]]
  $region22: #{_lambda_.1} parent=0
    _
  %s6 = ssub.s32 1, %s4
  %s7 = scalar_select 0, %s6, %s4
  // Predicated region
  $region2: #{_lambda_.1} parent=0 // pred_check
    _
  $region3: #{_lambda_.1} parent=0 // pred_check_branch
    %9 = sbr.rel (0) target = $region5
  $region4: #{_lambda_.1} parent=0 // pred_region
    _
  $region5: #{_lambda_.1} parent=0 // pred_fallthru
    _
  // Predicated region
  $region6: #{_lambda_.1} parent=0 // pred_check
    _
  $region7: #{_lambda_.1} parent=0 // pred_check_branch
    %11 = sbr.rel (0) target = $region9
  $region8: #{_lambda_.1} parent=0 // pred_region
    _
  $region9: #{_lambda_.1} parent=0 // pred_fallthru
    _
  // Predicated region
  $region10: #{_lambda_.1} parent=0 // pred_check
    _
  $region11: #{_lambda_.1} parent=0 // pred_check_branch
    %13 = sbr.rel (0) target = $region13
  $region12: #{_lambda_.1} parent=0 // pred_region
    _
  $region13: #{_lambda_.1} parent=0 // pred_fallthru
    _
  %v15 = vld [vmem:[%s0] sm:$0xff]
  %v16 = vld [vmem:[%s0 + $0x8] sm:$0xff]
  %v17 = vld [vmem:[%s0 + $0x10] sm:$0xff]
  %v18 = vld [vmem:[%s0 + $0x18] sm:$0xff]
  %v19 = vld [vmem:[%s1] sm:$0xf]
  %v20 = vld [vmem:[%s1 + $0x4] sm:$0xf]
  %v21 = vld [vmem:[%s1 + $0x8] sm:$0xf]
  %v22 = vld [vmem:[%s1 + $0xc] sm:$0xf]
  %v23 = vld [vmem:[%s1 + $0x10] sm:$0xf]
  %v24 = vld [vmem:[%s1 + $0x14] sm:$0xf]
  %v25 = vld [vmem:[%s1 + $0x18] sm:$0xf]
  %v26 = vld [vmem:[%s1 + $0x1c] sm:$0xf]
  %v27 = vld [vmem:[%s1 + $0x20] sm:$0xf]
  %v28 = vld [vmem:[%s1 + $0x24] sm:$0xf]
  %v29 = vld [vmem:[%s1 + $0x28] sm:$0xf]
  %v30 = vld [vmem:[%s1 + $0x2c] sm:$0xf]
  %v31 = vld [vmem:[%s1 + $0x30] sm:$0xf]
  %v32 = vld [vmem:[%s1 + $0x34] sm:$0xf]
  %v33 = vld [vmem:[%s1 + $0x38] sm:$0xf]
  %v34 = vld [vmem:[%s1 + $0x3c] sm:$0xf]
  %v35 = vld [vmem:[%s1 + $0x40] sm:$0xf]
  %v36 = vld [vmem:[%s1 + $0x44] sm:$0xf]
  %v37 = vld [vmem:[%s1 + $0x48] sm:$0xf]
  %v38 = vld [vmem:[%s1 + $0x4c] sm:$0xf]
  %v39 = vld [vmem:[%s1 + $0x50] sm:$0xf]
  %v40 = vld [vmem:[%s1 + $0x54] sm:$0xf]
  %v41 = vld [vmem:[%s1 + $0x58] sm:$0xf]
  %v42 = vld [vmem:[%s1 + $0x5c] sm:$0xf]
  %v43 = vld [vmem:[%s1 + $0x60] sm:$0xf]
  %v44 = vld [vmem:[%s1 + $0x64] sm:$0xf]
  %v45 = vld [vmem:[%s1 + $0x68] sm:$0xf]
  %v46 = vld [vmem:[%s1 + $0x6c] sm:$0xf]
  %v47 = vld [vmem:[%s1 + $0x70] sm:$0xf]
  %v48 = vld [vmem:[%s1 + $0x74] sm:$0xf]
  %v49 = vld [vmem:[%s1 + $0x78] sm:$0xf]
  %v50 = vld [vmem:[%s1 + $0x7c] sm:$0xf]
  %v51 = vld [vmem:[%s1 + $0x80] sm:$0xf]
  %v52 = vld [vmem:[%s1 + $0x84] sm:$0xf]
  %v53 = vld [vmem:[%s1 + $0x88] sm:$0xf]
  %v54 = vld [vmem:[%s1 + $0x8c] sm:$0xf]
  %v55 = vld [vmem:[%s1 + $0x90] sm:$0xf]
  %v56 = vld [vmem:[%s1 + $0x94] sm:$0xf]
  %v57 = vld [vmem:[%s1 + $0x98] sm:$0xf]
  %v58 = vld [vmem:[%s1 + $0x9c] sm:$0xf]
  %v59 = vld [vmem:[%s1 + $0xa0] sm:$0xf]
  %v60 = vld [vmem:[%s1 + $0xa4] sm:$0xf]
  %v61 = vld [vmem:[%s1 + $0xa8] sm:$0xf]
  %v62 = vld [vmem:[%s1 + $0xac] sm:$0xf]
  %v63 = vld [vmem:[%s1 + $0xb0] sm:$0xf]
  %v64 = vld [vmem:[%s1 + $0xb4] sm:$0xf]
  %v65 = vld [vmem:[%s1 + $0xb8] sm:$0xf]
  %v66 = vld [vmem:[%s1 + $0xbc] sm:$0xf]
  %v67 = vld [vmem:[%s1 + $0xc0] sm:$0xf]
  %v68 = vld [vmem:[%s1 + $0xc4] sm:$0xf]
  %v69 = vld [vmem:[%s1 + $0xc8] sm:$0xf]
  %v70 = vld [vmem:[%s1 + $0xcc] sm:$0xf]
  %v71 = vld [vmem:[%s1 + $0xd0] sm:$0xf]
  %v72 = vld [vmem:[%s1 + $0xd4] sm:$0xf]
  %v73 = vld [vmem:[%s1 + $0xd8] sm:$0xf]
  %v74 = vld [vmem:[%s1 + $0xdc] sm:$0xf]
  %v75 = vld [vmem:[%s1 + $0xe0] sm:$0xf]
  %v76 = vld [vmem:[%s1 + $0xe4] sm:$0xf]
  %v77 = vld [vmem:[%s1 + $0xe8] sm:$0xf]
  %v78 = vld [vmem:[%s1 + $0xec] sm:$0xf]
  %v79 = vld [vmem:[%s1 + $0xf0] sm:$0xf]
  %v80 = vld [vmem:[%s1 + $0xf4] sm:$0xf]
  %v81 = vld [vmem:[%s1 + $0xf8] sm:$0xf]
  %v82 = vld [vmem:[%s1 + $0xfc] sm:$0xf]
  %v83 = vld [vmem:[%s1 + $0x100] sm:$0xf]
  %v84 = vld [vmem:[%s1 + $0x104] sm:$0xf]
  %v85 = vld [vmem:[%s1 + $0x108] sm:$0xf]
  %v86 = vld [vmem:[%s1 + $0x10c] sm:$0xf]
  %v87 = vld [vmem:[%s1 + $0x110] sm:$0xf]
  %v88 = vld [vmem:[%s1 + $0x114] sm:$0xf]
  %v89 = vld [vmem:[%s1 + $0x118] sm:$0xf]
  %v90 = vld [vmem:[%s1 + $0x11c] sm:$0xf]
  %v91 = vld [vmem:[%s1 + $0x120] sm:$0xf]
  %v92 = vld [vmem:[%s1 + $0x124] sm:$0xf]
  %v93 = vld [vmem:[%s1 + $0x128] sm:$0xf]
  %v94 = vld [vmem:[%s1 + $0x12c] sm:$0xf]
  %v95 = vld [vmem:[%s1 + $0x130] sm:$0xf]
  %v96 = vld [vmem:[%s1 + $0x134] sm:$0xf]
  %v97 = vld [vmem:[%s1 + $0x138] sm:$0xf]
  %v98 = vld [vmem:[%s1 + $0x13c] sm:$0xf]
  %v99 = vld [vmem:[%s1 + $0x140] sm:$0xf]
  %v100 = vld [vmem:[%s1 + $0x144] sm:$0xf]
  %v101 = vld [vmem:[%s1 + $0x148] sm:$0xf]
  %v102 = vld [vmem:[%s1 + $0x14c] sm:$0xf]
  %v103 = vld [vmem:[%s1 + $0x150] sm:$0xf]
  %v104 = vld [vmem:[%s1 + $0x154] sm:$0xf]
  %v105 = vld [vmem:[%s1 + $0x158] sm:$0xf]
  %v106 = vld [vmem:[%s1 + $0x15c] sm:$0xf]
  %v107 = vld [vmem:[%s1 + $0x160] sm:$0xf]
  %v108 = vld [vmem:[%s1 + $0x164] sm:$0xf]
  %v109 = vld [vmem:[%s1 + $0x168] sm:$0xf]
  %v110 = vld [vmem:[%s1 + $0x16c] sm:$0xf]
  %v111 = vld [vmem:[%s1 + $0x170] sm:$0xf]
  %v112 = vld [vmem:[%s1 + $0x174] sm:$0xf]
  %v113 = vld [vmem:[%s1 + $0x178] sm:$0xf]
  %v114 = vld [vmem:[%s1 + $0x17c] sm:$0xf]
  %v115 = vld [vmem:[%s1 + $0x180] sm:$0xf]
  %v116 = vld [vmem:[%s1 + $0x184] sm:$0xf]
  %v117 = vld [vmem:[%s1 + $0x188] sm:$0xf]
  %v118 = vld [vmem:[%s1 + $0x18c] sm:$0xf]
  %v119 = vld [vmem:[%s1 + $0x190] sm:$0xf]
  %v120 = vld [vmem:[%s1 + $0x194] sm:$0xf]
  %v121 = vld [vmem:[%s1 + $0x198] sm:$0xf]
  %v122 = vld [vmem:[%s1 + $0x19c] sm:$0xf]
  %v123 = vld [vmem:[%s1 + $0x1a0] sm:$0xf]
  %v124 = vld [vmem:[%s1 + $0x1a4] sm:$0xf]
  %v125 = vld [vmem:[%s1 + $0x1a8] sm:$0xf]
  %v126 = vld [vmem:[%s1 + $0x1ac] sm:$0xf]
  %v127 = vld [vmem:[%s1 + $0x1b0] sm:$0xf]
  %v128 = vld [vmem:[%s1 + $0x1b4] sm:$0xf]
  %v129 = vld [vmem:[%s1 + $0x1b8] sm:$0xf]
  %v130 = vld [vmem:[%s1 + $0x1bc] sm:$0xf]
  %v131 = vld [vmem:[%s1 + $0x1c0] sm:$0xf]
  %v132 = vld [vmem:[%s1 + $0x1c4] sm:$0xf]
  %v133 = vld [vmem:[%s1 + $0x1c8] sm:$0xf]
  %v134 = vld [vmem:[%s1 + $0x1cc] sm:$0xf]
  %v135 = vld [vmem:[%s1 + $0x1d0] sm:$0xf]
  %v136 = vld [vmem:[%s1 + $0x1d4] sm:$0xf]
  %v137 = vld [vmem:[%s1 + $0x1d8] sm:$0xf]
  %v138 = vld [vmem:[%s1 + $0x1dc] sm:$0xf]
  %v139 = vld [vmem:[%s1 + $0x1e0] sm:$0xf]
  %v140 = vld [vmem:[%s1 + $0x1e4] sm:$0xf]
  %v141 = vld [vmem:[%s1 + $0x1e8] sm:$0xf]
  %v142 = vld [vmem:[%s1 + $0x1ec] sm:$0xf]
  %v143 = vld [vmem:[%s1 + $0x1f0] sm:$0xf]
  %v144 = vld [vmem:[%s1 + $0x1f4] sm:$0xf]
  %v145 = vld [vmem:[%s1 + $0x1f8] sm:$0xf]
  %v146 = vld [vmem:[%s1 + $0x1fc] sm:$0xf]
  %v151 = vunpack.c.l.b16 %v15
  %v152 = vunpack.c.h.b16 %v15
  %v153 = vunpack.c.l.b16 %v16
  %v154 = vunpack.c.h.b16 %v16
  %v155 = vunpack.c.l.b16 %v17
  %v156 = vunpack.c.h.b16 %v17
  %v157 = vunpack.c.l.b16 %v18
  %v158 = vunpack.c.h.b16 %v18
  %v159 = vpack.c.b16 %v151, %v151
  %v160 = vpack.c.b16 %v152, %v152
  %v161 = vpack.c.b16 %v153, %v153
  %v162 = vpack.c.b16 %v154, %v154
  %v163 = vpack.c.b16 %v155, %v155
  %v164 = vpack.c.b16 %v156, %v156
  %v165 = vpack.c.b16 %v157, %v157
  %v166 = vpack.c.b16 %v158, %v158
  %v303 = vunpack.c.l.b16 %v19
  %v304 = vunpack.c.l.b16 %v20
  %v305 = vunpack.c.l.b16 %v21
  %v306 = vunpack.c.l.b16 %v22
  %v307 = vunpack.c.l.b16 %v23
  %v308 = vunpack.c.l.b16 %v24
  %v309 = vunpack.c.l.b16 %v25
  %v310 = vunpack.c.l.b16 %v26
  %v311 = vunpack.c.l.b16 %v27
  %v312 = vunpack.c.l.b16 %v28
  %v313 = vunpack.c.l.b16 %v29
  %v314 = vunpack.c.l.b16 %v30
  %v315 = vunpack.c.l.b16 %v31
  %v316 = vunpack.c.l.b16 %v32
  %v317 = vunpack.c.l.b16 %v33
  %v318 = vunpack.c.l.b16 %v34
  %v319 = vunpack.c.l.b16 %v35
  %v320 = vunpack.c.l.b16 %v36
  %v321 = vunpack.c.l.b16 %v37
  %v322 = vunpack.c.l.b16 %v38
  %v323 = vunpack.c.l.b16 %v39
  %v324 = vunpack.c.l.b16 %v40
  %v325 = vunpack.c.l.b16 %v41
  %v326 = vunpack.c.l.b16 %v42
  %v327 = vunpack.c.l.b16 %v43
  %v328 = vunpack.c.l.b16 %v44
  %v329 = vunpack.c.l.b16 %v45
  %v330 = vunpack.c.l.b16 %v46
  %v331 = vunpack.c.l.b16 %v47
  %v332 = vunpack.c.l.b16 %v48
  %v333 = vunpack.c.l.b16 %v49
  %v334 = vunpack.c.l.b16 %v50
  %v335 = vunpack.c.l.b16 %v51
  %v336 = vunpack.c.l.b16 %v52
  %v337 = vunpack.c.l.b16 %v53
  %v338 = vunpack.c.l.b16 %v54
  %v339 = vunpack.c.l.b16 %v55
  %v340 = vunpack.c.l.b16 %v56
  %v341 = vunpack.c.l.b16 %v57
  %v342 = vunpack.c.l.b16 %v58
  %v343 = vunpack.c.l.b16 %v59
  %v344 = vunpack.c.l.b16 %v60
  %v345 = vunpack.c.l.b16 %v61
  %v346 = vunpack.c.l.b16 %v62
  %v347 = vunpack.c.l.b16 %v63
  %v348 = vunpack.c.l.b16 %v64
  %v349 = vunpack.c.l.b16 %v65
  %v350 = vunpack.c.l.b16 %v66
  %v351 = vunpack.c.l.b16 %v67
  %v352 = vunpack.c.l.b16 %v68
  %v353 = vunpack.c.l.b16 %v69
  %v354 = vunpack.c.l.b16 %v70
  %v355 = vunpack.c.l.b16 %v71
  %v356 = vunpack.c.l.b16 %v72
  %v357 = vunpack.c.l.b16 %v73
  %v358 = vunpack.c.l.b16 %v74
  %v359 = vunpack.c.l.b16 %v75
  %v360 = vunpack.c.l.b16 %v76
  %v361 = vunpack.c.l.b16 %v77
  %v362 = vunpack.c.l.b16 %v78
  %v363 = vunpack.c.l.b16 %v79
  %v364 = vunpack.c.l.b16 %v80
  %v365 = vunpack.c.l.b16 %v81
  %v366 = vunpack.c.l.b16 %v82
  %v367 = vunpack.c.l.b16 %v83
  %v368 = vunpack.c.l.b16 %v84
  %v369 = vunpack.c.l.b16 %v85
  %v370 = vunpack.c.l.b16 %v86
  %v371 = vunpack.c.l.b16 %v87
  %v372 = vunpack.c.l.b16 %v88
  %v373 = vunpack.c.l.b16 %v89
  %v374 = vunpack.c.l.b16 %v90
  %v375 = vunpack.c.l.b16 %v91
  %v376 = vunpack.c.l.b16 %v92
  %v377 = vunpack.c.l.b16 %v93
  %v378 = vunpack.c.l.b16 %v94
  %v379 = vunpack.c.l.b16 %v95
  %v380 = vunpack.c.l.b16 %v96
  %v381 = vunpack.c.l.b16 %v97
  %v382 = vunpack.c.l.b16 %v98
  %v383 = vunpack.c.l.b16 %v99
  %v384 = vunpack.c.l.b16 %v100
  %v385 = vunpack.c.l.b16 %v101
  %v386 = vunpack.c.l.b16 %v102
  %v387 = vunpack.c.l.b16 %v103
  %v388 = vunpack.c.l.b16 %v104
  %v389 = vunpack.c.l.b16 %v105
  %v390 = vunpack.c.l.b16 %v106
  %v391 = vunpack.c.l.b16 %v107
  %v392 = vunpack.c.l.b16 %v108
  %v393 = vunpack.c.l.b16 %v109
  %v394 = vunpack.c.l.b16 %v110
  %v395 = vunpack.c.l.b16 %v111
  %v396 = vunpack.c.l.b16 %v112
  %v397 = vunpack.c.l.b16 %v113
  %v398 = vunpack.c.l.b16 %v114
  %v399 = vunpack.c.l.b16 %v115
  %v400 = vunpack.c.l.b16 %v116
  %v401 = vunpack.c.l.b16 %v117
  %v402 = vunpack.c.l.b16 %v118
  %v403 = vunpack.c.l.b16 %v119
  %v404 = vunpack.c.l.b16 %v120
  %v405 = vunpack.c.l.b16 %v121
  %v406 = vunpack.c.l.b16 %v122
  %v407 = vunpack.c.l.b16 %v123
  %v408 = vunpack.c.l.b16 %v124
  %v409 = vunpack.c.l.b16 %v125
  %v410 = vunpack.c.l.b16 %v126
  %v411 = vunpack.c.l.b16 %v127
  %v412 = vunpack.c.l.b16 %v128
  %v413 = vunpack.c.l.b16 %v129
  %v414 = vunpack.c.l.b16 %v130
  %v415 = vunpack.c.l.b16 %v131
  %v416 = vunpack.c.l.b16 %v132
  %v417 = vunpack.c.l.b16 %v133
  %v418 = vunpack.c.l.b16 %v134
  %v419 = vunpack.c.l.b16 %v135
  %v420 = vunpack.c.l.b16 %v136
  %v421 = vunpack.c.l.b16 %v137
  %v422 = vunpack.c.l.b16 %v138
  %v423 = vunpack.c.l.b16 %v139
  %v424 = vunpack.c.l.b16 %v140
  %v425 = vunpack.c.l.b16 %v141
  %v426 = vunpack.c.l.b16 %v142
  %v427 = vunpack.c.l.b16 %v143
  %v428 = vunpack.c.l.b16 %v144
  %v429 = vunpack.c.l.b16 %v145
  %v430 = vunpack.c.l.b16 %v146
  %v431 = vpack.c.b16 %v304, %v303
  %v432 = vpack.c.b16 %v306, %v305
  %v433 = vpack.c.b16 %v308, %v307
  %v434 = vpack.c.b16 %v310, %v309
  %v435 = vpack.c.b16 %v312, %v311
  %v436 = vpack.c.b16 %v314, %v313
  %v437 = vpack.c.b16 %v316, %v315
  %v438 = vpack.c.b16 %v318, %v317
  %v439 = vpack.c.b16 %v320, %v319
  %v440 = vpack.c.b16 %v322, %v321
  %v441 = vpack.c.b16 %v324, %v323
  %v442 = vpack.c.b16 %v326, %v325
  %v443 = vpack.c.b16 %v328, %v327
  %v444 = vpack.c.b16 %v330, %v329
  %v445 = vpack.c.b16 %v332, %v331
  %v446 = vpack.c.b16 %v334, %v333
  %v447 = vpack.c.b16 %v336, %v335
  %v448 = vpack.c.b16 %v338, %v337
  %v449 = vpack.c.b16 %v340, %v339
  %v450 = vpack.c.b16 %v342, %v341
  %v451 = vpack.c.b16 %v344, %v343
  %v452 = vpack.c.b16 %v346, %v345
  %v453 = vpack.c.b16 %v348, %v347
  %v454 = vpack.c.b16 %v350, %v349
  %v455 = vpack.c.b16 %v352, %v351
  %v456 = vpack.c.b16 %v354, %v353
  %v457 = vpack.c.b16 %v356, %v355
  %v458 = vpack.c.b16 %v358, %v357
  %v459 = vpack.c.b16 %v360, %v359
  %v460 = vpack.c.b16 %v362, %v361
  %v461 = vpack.c.b16 %v364, %v363
  %v462 = vpack.c.b16 %v366, %v365
  %v463 = vpack.c.b16 %v368, %v367
  %v464 = vpack.c.b16 %v370, %v369
  %v465 = vpack.c.b16 %v372, %v371
  %v466 = vpack.c.b16 %v374, %v373
  %v467 = vpack.c.b16 %v376, %v375
  %v468 = vpack.c.b16 %v378, %v377
  %v469 = vpack.c.b16 %v380, %v379
  %v470 = vpack.c.b16 %v382, %v381
  %v471 = vpack.c.b16 %v384, %v383
  %v472 = vpack.c.b16 %v386, %v385
  %v473 = vpack.c.b16 %v388, %v387
  %v474 = vpack.c.b16 %v390, %v389
  %v475 = vpack.c.b16 %v392, %v391
  %v476 = vpack.c.b16 %v394, %v393
  %v477 = vpack.c.b16 %v396, %v395
  %v478 = vpack.c.b16 %v398, %v397
  %v479 = vpack.c.b16 %v400, %v399
  %v480 = vpack.c.b16 %v402, %v401
  %v481 = vpack.c.b16 %v404, %v403
  %v482 = vpack.c.b16 %v406, %v405
  %v483 = vpack.c.b16 %v408, %v407
  %v484 = vpack.c.b16 %v410, %v409
  %v485 = vpack.c.b16 %v412, %v411
  %v486 = vpack.c.b16 %v414, %v413
  %v487 = vpack.c.b16 %v416, %v415
  %v488 = vpack.c.b16 %v418, %v417
  %v489 = vpack.c.b16 %v420, %v419
  %v490 = vpack.c.b16 %v422, %v421
  %v491 = vpack.c.b16 %v424, %v423
  %v492 = vpack.c.b16 %v426, %v425
  %v493 = vpack.c.b16 %v428, %v427
  %v494 = vpack.c.b16 %v430, %v429
  %559 = vmatprep.subr.bf16.mxu0 0
  %560 = vmatpush1.bf16.msra.mxu0 %v431
  %561 = vmatprep.subr.bf16.mxu0 0
  %562 = vmatpush1.bf16.msra.mxu0 %v432
  %563 = vmatprep.subr.bf16.mxu0 0
  %564 = vmatpush1.bf16.msra.mxu0 %v433
  %565 = vmatprep.subr.bf16.mxu0 0
  %566 = vmatpush1.bf16.msra.mxu0 %v434
  %567 = vmatprep.subr.bf16.mxu0 0
  %568 = vmatpush1.bf16.msra.mxu0 %v435
  %569 = vmatprep.subr.bf16.mxu0 0
  %570 = vmatpush1.bf16.msra.mxu0 %v436
  %571 = vmatprep.subr.bf16.mxu0 0
  %572 = vmatpush1.bf16.msra.mxu0 %v437
  %573 = vmatprep.subr.bf16.mxu0 0
  %574 = vmatpush1.bf16.msra.mxu0 %v438
  %575 = vmatprep.subr.bf16.mxu0 0
  %576 = vmatpush1.bf16.msra.mxu0 %v439
  %577 = vmatprep.subr.bf16.mxu0 0
  %578 = vmatpush1.bf16.msra.mxu0 %v440
  %579 = vmatprep.subr.bf16.mxu0 0
  %580 = vmatpush1.bf16.msra.mxu0 %v441
  %581 = vmatprep.subr.bf16.mxu0 0
  %582 = vmatpush1.bf16.msra.mxu0 %v442
  %583 = vmatprep.subr.bf16.mxu0 0
  %584 = vmatpush1.bf16.msra.mxu0 %v443
  %585 = vmatprep.subr.bf16.mxu0 0
  %586 = vmatpush1.bf16.msra.mxu0 %v444
  %587 = vmatprep.subr.bf16.mxu0 0
  %588 = vmatpush1.bf16.msra.mxu0 %v445
  %589 = vmatprep.subr.bf16.mxu0 0
  %590 = vmatpush1.bf16.msra.mxu0 %v446
  %591 = vmatprep.mubr.bf16.mxu0 %v160
  %592 = vmatmul.mubr.bf16.gmra.mrb[0].mxu0 %v159
  %v593 = vpop.f32.mrb[0].mxu0
  %v594 = vadd.f32 0.0, %v593
  %v595 = vpop.f32.mrb[0].mxu0
  %v596 = vpop.f32.mrb[0].mxu0
  %v597 = vpop.f32.mrb[0].mxu0
  %598 = vdwg.mxu0
  %599 = vmatprep.subr.bf16.mxu0 0
  %600 = vmatpush1.bf16.msra.mxu0 %v447
  %601 = vmatprep.subr.bf16.mxu0 0
  %602 = vmatpush1.bf16.msra.mxu0 %v448
  %603 = vmatprep.subr.bf16.mxu0 0
  %604 = vmatpush1.bf16.msra.mxu0 %v449
  %605 = vmatprep.subr.bf16.mxu0 0
  %606 = vmatpush1.bf16.msra.mxu0 %v450
  %607 = vmatprep.subr.bf16.mxu0 0
  %608 = vmatpush1.bf16.msra.mxu0 %v451
  %609 = vmatprep.subr.bf16.mxu0 0
  %610 = vmatpush1.bf16.msra.mxu0 %v452
  %611 = vmatprep.subr.bf16.mxu0 0
  %612 = vmatpush1.bf16.msra.mxu0 %v453
  %613 = vmatprep.subr.bf16.mxu0 0
  %614 = vmatpush1.bf16.msra.mxu0 %v454
  %615 = vmatprep.subr.bf16.mxu0 0
  %616 = vmatpush1.bf16.msra.mxu0 %v455
  %617 = vmatprep.subr.bf16.mxu0 0
  %618 = vmatpush1.bf16.msra.mxu0 %v456
  %619 = vmatprep.subr.bf16.mxu0 0
  %620 = vmatpush1.bf16.msra.mxu0 %v457
  %621 = vmatprep.subr.bf16.mxu0 0
  %622 = vmatpush1.bf16.msra.mxu0 %v458
  %623 = vmatprep.subr.bf16.mxu0 0
  %624 = vmatpush1.bf16.msra.mxu0 %v459
  %625 = vmatprep.subr.bf16.mxu0 0
  %626 = vmatpush1.bf16.msra.mxu0 %v460
  %627 = vmatprep.subr.bf16.mxu0 0
  %628 = vmatpush1.bf16.msra.mxu0 %v461
  %629 = vmatprep.subr.bf16.mxu0 0
  %630 = vmatpush1.bf16.msra.mxu0 %v462
  %631 = vmatprep.mubr.bf16.mxu0 %v162
  %632 = vmatmul.mubr.bf16.gmra.mrb[0].mxu0 %v161
  %v633 = vpop.f32.mrb[0].mxu0
  %v634 = vadd.f32 %v594, %v633
  %v635 = vpop.f32.mrb[0].mxu0
  %v636 = vpop.f32.mrb[0].mxu0
  %v637 = vpop.f32.mrb[0].mxu0
  %638 = vdwg.mxu0
  %639 = vmatprep.subr.bf16.mxu0 0
  %640 = vmatpush1.bf16.msra.mxu0 %v463
  %641 = vmatprep.subr.bf16.mxu0 0
  %642 = vmatpush1.bf16.msra.mxu0 %v464
  %643 = vmatprep.subr.bf16.mxu0 0
  %644 = vmatpush1.bf16.msra.mxu0 %v465
  %645 = vmatprep.subr.bf16.mxu0 0
  %646 = vmatpush1.bf16.msra.mxu0 %v466
  %647 = vmatprep.subr.bf16.mxu0 0
  %648 = vmatpush1.bf16.msra.mxu0 %v467
  %649 = vmatprep.subr.bf16.mxu0 0
  %650 = vmatpush1.bf16.msra.mxu0 %v468
  %651 = vmatprep.subr.bf16.mxu0 0
  %652 = vmatpush1.bf16.msra.mxu0 %v469
  %653 = vmatprep.subr.bf16.mxu0 0
  %654 = vmatpush1.bf16.msra.mxu0 %v470
  %655 = vmatprep.subr.bf16.mxu0 0
  %656 = vmatpush1.bf16.msra.mxu0 %v471
  %657 = vmatprep.subr.bf16.mxu0 0
  %658 = vmatpush1.bf16.msra.mxu0 %v472
  %659 = vmatprep.subr.bf16.mxu0 0
  %660 = vmatpush1.bf16.msra.mxu0 %v473
  %661 = vmatprep.subr.bf16.mxu0 0
  %662 = vmatpush1.bf16.msra.mxu0 %v474
  %663 = vmatprep.subr.bf16.mxu0 0
  %664 = vmatpush1.bf16.msra.mxu0 %v475
  %665 = vmatprep.subr.bf16.mxu0 0
  %666 = vmatpush1.bf16.msra.mxu0 %v476
  %667 = vmatprep.subr.bf16.mxu0 0
  %668 = vmatpush1.bf16.msra.mxu0 %v477
  %669 = vmatprep.subr.bf16.mxu0 0
  %670 = vmatpush1.bf16.msra.mxu0 %v478
  %671 = vmatprep.mubr.bf16.mxu0 %v164
  %672 = vmatmul.mubr.bf16.gmra.mrb[0].mxu0 %v163
  %v673 = vpop.f32.mrb[0].mxu0
  %v674 = vadd.f32 %v634, %v673
  %v675 = vpop.f32.mrb[0].mxu0
  %v676 = vpop.f32.mrb[0].mxu0
  %v677 = vpop.f32.mrb[0].mxu0
  %678 = vdwg.mxu0
  %679 = vmatprep.subr.bf16.mxu0 0
  %680 = vmatpush1.bf16.msra.mxu0 %v479
  %681 = vmatprep.subr.bf16.mxu0 0
  %682 = vmatpush1.bf16.msra.mxu0 %v480
  %683 = vmatprep.subr.bf16.mxu0 0
  %684 = vmatpush1.bf16.msra.mxu0 %v481
  %685 = vmatprep.subr.bf16.mxu0 0
  %686 = vmatpush1.bf16.msra.mxu0 %v482
  %687 = vmatprep.subr.bf16.mxu0 0
  %688 = vmatpush1.bf16.msra.mxu0 %v483
  %689 = vmatprep.subr.bf16.mxu0 0
  %690 = vmatpush1.bf16.msra.mxu0 %v484
  %691 = vmatprep.subr.bf16.mxu0 0
  %692 = vmatpush1.bf16.msra.mxu0 %v485
  %693 = vmatprep.subr.bf16.mxu0 0
  %694 = vmatpush1.bf16.msra.mxu0 %v486
  %695 = vmatprep.subr.bf16.mxu0 0
  %696 = vmatpush1.bf16.msra.mxu0 %v487
  %697 = vmatprep.subr.bf16.mxu0 0
  %698 = vmatpush1.bf16.msra.mxu0 %v488
  %699 = vmatprep.subr.bf16.mxu0 0
  %700 = vmatpush1.bf16.msra.mxu0 %v489
  %701 = vmatprep.subr.bf16.mxu0 0
  %702 = vmatpush1.bf16.msra.mxu0 %v490
  %703 = vmatprep.subr.bf16.mxu0 0
  %704 = vmatpush1.bf16.msra.mxu0 %v491
  %705 = vmatprep.subr.bf16.mxu0 0
  %706 = vmatpush1.bf16.msra.mxu0 %v492
  %707 = vmatprep.subr.bf16.mxu0 0
  %708 = vmatpush1.bf16.msra.mxu0 %v493
  %709 = vmatprep.subr.bf16.mxu0 0
  %710 = vmatpush1.bf16.msra.mxu0 %v494
  %711 = vmatprep.mubr.bf16.mxu0 %v166
  %712 = vmatmul.mubr.bf16.gmra.mrb[0].mxu0 %v165
  %v713 = vpop.f32.mrb[0].mxu0
  %v714 = vadd.f32 %v674, %v713
  %v715 = vpop.f32.mrb[0].mxu0
  %v716 = vpop.f32.mrb[0].mxu0
  %v717 = vpop.f32.mrb[0].mxu0
  %718 = vdwg.mxu0
  %720 = vrot.lane.b32.xlu0 %v714, 96
  %v721 = vpop.permute.xlu0 %720
  %vm722 = vcmask 261120
  %v723 = vsel %vm722, %v714, 0
  %v725 = vsel %vm722, %v721, 0
  %727 = vmatprep.subr.mxu0 0.0
  %728 = vmatpush1.xpose.msra.mxu0 %v725
  %729 = vmatprep.subr.mxu0 0.0
  %730 = vmatpush1.xpose.msra.mxu0 0.0
  %731 = vmatprep.subr.mxu0 0.0
  %732 = vmatpush1.xpose.msra.mxu0 0.0
  %733 = vmatprep.subr.mxu0 0.0
  %734 = vmatpush1.xpose.msra.mxu0 0.0
  %735 = vmatprep.subr.mxu0 0.0
  %736 = vmatpush1.xpose.msra.mxu0 0.0
  %737 = vmatprep.subr.mxu0 0.0
  %738 = vmatpush1.xpose.msra.mxu0 0.0
  %739 = vmatprep.subr.mxu0 0.0
  %740 = vmatpush1.xpose.msra.mxu0 0.0
  %741 = vmatprep.subr.mxu0 0.0
  %742 = vmatpush1.xpose.msra.mxu0 0.0
  %743 = vmatprep.subr.mxu0 0.0
  %744 = vmatpush1.xpose.msra.mxu0 0.0
  %745 = vmatprep.subr.mxu0 0.0
  %746 = vmatpush1.xpose.msra.mxu0 0.0
  %747 = vmatprep.subr.mxu0 0.0
  %748 = vmatpush1.xpose.msra.mxu0 0.0
  %749 = vmatprep.subr.mxu0 0.0
  %750 = vmatpush1.xpose.msra.mxu0 0.0
  %751 = vmatprep.subr.mxu0 0.0
  %752 = vmatpush1.xpose.msra.mxu0 0.0
  %753 = vmatprep.subr.mxu0 0.0
  %754 = vmatpush1.xpose.msra.mxu0 0.0
  %755 = vmatprep.subr.mxu0 0.0
  %756 = vmatpush1.xpose.msra.mxu0 0.0
  %757 = vmatprep.subr.mxu0 0.0
  %758 = vmatpush1.xpose.msra.mxu0 0.0
  %759 = vmatprep.subr.mxu0 0.0
  %760 = vmatpush1.xpose.msra.mxu0 0.0
  %761 = vmatprep.subr.mxu0 0.0
  %762 = vmatpush1.xpose.msra.mxu0 0.0
  %763 = vmatprep.subr.mxu0 0.0
  %764 = vmatpush1.xpose.msra.mxu0 0.0
  %765 = vmatprep.subr.mxu0 0.0
  %766 = vmatpush1.xpose.msra.mxu0 0.0
  %767 = vmatprep.subr.mxu0 0.0
  %768 = vmatpush1.xpose.msra.mxu0 0.0
  %769 = vmatprep.subr.mxu0 0.0
  %770 = vmatpush1.xpose.msra.mxu0 0.0
  %771 = vmatprep.subr.mxu0 0.0
  %772 = vmatpush1.xpose.msra.mxu0 0.0
  %773 = vmatprep.subr.mxu0 0.0
  %774 = vmatpush1.xpose.msra.mxu0 0.0
  %775 = vmatprep.subr.mxu0 0.0
  %776 = vmatpush1.xpose.msra.mxu0 0.0
  %777 = vmatprep.subr.mxu0 0.0
  %778 = vmatpush1.xpose.msra.mxu0 0.0
  %779 = vmatprep.subr.mxu0 0.0
  %780 = vmatpush1.xpose.msra.mxu0 0.0
  %781 = vmatprep.subr.mxu0 0.0
  %782 = vmatpush1.xpose.msra.mxu0 0.0
  %783 = vmatprep.subr.mxu0 0.0
  %784 = vmatpush1.xpose.msra.mxu0 0.0
  %785 = vmatprep.subr.mxu0 0.0
  %786 = vmatpush1.xpose.msra.mxu0 0.0
  %787 = vmatprep.subr.mxu0 0.0
  %788 = vmatpush1.xpose.msra.mxu0 0.0
  %789 = vmatprep.subr.mxu0 0.0
  %790 = vmatpush1.xpose.msra.mxu0 0.0
  %791 = vmatprep.mubr.f32.mxu0 0.0
  %792 = vmatmul.mubr.f32.gmra.mrb[0].mxu0 %v723
  %v793 = vpop.f32.mrb[0].mxu0
  %v794 = vadd.f32 0.0, %v793
  %v795 = vpop.f32.mrb[0].mxu0
  %796 = vdwg.mxu0
  %vm797 = vcmask 64512
  %v798 = vsel %vm797, %v794, -inf
  %799 = vmax.xlane.f32.xlu0 %v798
  %v800 = vpop.xlane.xlu0 %799
  %v801 = vsub.f32 %v794, %v800
  %v802 = vmul.f32 %v801, 1.442695
  %v803 = vpow.pop %v802
  %v804 = vsel %vm797, %v803, 0.0
  %805 = vadd.xlane.f32.xlu0 %v804
  %v806 = vpop.xlane.xlu0 %805
  %v807 = vrcp.pop %v806
  %v808 = vmul.f32 %v803, %v807
  %v809 = vld [vmem:[%s2] sm:$0x1]
  %v811 = vlaneseq
  %v812 = vshrl.u32 %v811, 7
  %v813 = vsub.s32 0, %v812
  %v814 = vrot.slane %v809, %v813
  %816 = vrot.lane.b32.xlu0 %v714, 64
  %v817 = vpop.permute.xlu0 %816
  %v820 = vsel %vm797, %v808, 0
  %822 = vmatprep.subr.mxu0 0.0
  %823 = vmatpush1.msra.mxu0 %v817
  %824 = vmatprep.subr.mxu0 0.0
  %825 = vmatpush1.msra.mxu0 0.0
  %826 = vmatprep.subr.mxu0 0.0
  %827 = vmatpush1.msra.mxu0 0.0
  %828 = vmatprep.subr.mxu0 0.0
  %829 = vmatpush1.msra.mxu0 0.0
  %830 = vmatprep.subr.mxu0 0.0
  %831 = vmatpush1.msra.mxu0 0.0
  %832 = vmatprep.subr.mxu0 0.0
  %833 = vmatpush1.msra.mxu0 0.0
  %834 = vmatprep.subr.mxu0 0.0
  %835 = vmatpush1.msra.mxu0 0.0
  %836 = vmatprep.subr.mxu0 0.0
  %837 = vmatpush1.msra.mxu0 0.0
  %838 = vmatprep.subr.mxu0 0.0
  %839 = vmatpush1.msra.mxu0 0.0
  %840 = vmatprep.subr.mxu0 0.0
  %841 = vmatpush1.msra.mxu0 0.0
  %842 = vmatprep.subr.mxu0 0.0
  %843 = vmatpush1.msra.mxu0 0.0
  %844 = vmatprep.subr.mxu0 0.0
  %845 = vmatpush1.msra.mxu0 0.0
  %846 = vmatprep.subr.mxu0 0.0
  %847 = vmatpush1.msra.mxu0 0.0
  %848 = vmatprep.subr.mxu0 0.0
  %849 = vmatpush1.msra.mxu0 0.0
  %850 = vmatprep.subr.mxu0 0.0
  %851 = vmatpush1.msra.mxu0 0.0
  %852 = vmatprep.subr.mxu0 0.0
  %853 = vmatpush1.msra.mxu0 0.0
  %854 = vmatprep.subr.mxu0 0.0
  %855 = vmatpush1.msra.mxu0 0.0
  %856 = vmatprep.subr.mxu0 0.0
  %857 = vmatpush1.msra.mxu0 0.0
  %858 = vmatprep.subr.mxu0 0.0
  %859 = vmatpush1.msra.mxu0 0.0
  %860 = vmatprep.subr.mxu0 0.0
  %861 = vmatpush1.msra.mxu0 0.0
  %862 = vmatprep.subr.mxu0 0.0
  %863 = vmatpush1.msra.mxu0 0.0
  %864 = vmatprep.subr.mxu0 0.0
  %865 = vmatpush1.msra.mxu0 0.0
  %866 = vmatprep.subr.mxu0 0.0
  %867 = vmatpush1.msra.mxu0 0.0
  %868 = vmatprep.subr.mxu0 0.0
  %869 = vmatpush1.msra.mxu0 0.0
  %870 = vmatprep.subr.mxu0 0.0
  %871 = vmatpush1.msra.mxu0 0.0
  %872 = vmatprep.subr.mxu0 0.0
  %873 = vmatpush1.msra.mxu0 0.0
  %874 = vmatprep.subr.mxu0 0.0
  %875 = vmatpush1.msra.mxu0 0.0
  %876 = vmatprep.subr.mxu0 0.0
  %877 = vmatpush1.msra.mxu0 0.0
  %878 = vmatprep.subr.mxu0 0.0
  %879 = vmatpush1.msra.mxu0 0.0
  %880 = vmatprep.subr.mxu0 0.0
  %881 = vmatpush1.msra.mxu0 0.0
  %882 = vmatprep.subr.mxu0 0.0
  %883 = vmatpush1.msra.mxu0 0.0
  %884 = vmatprep.subr.mxu0 0.0
  %885 = vmatpush1.msra.mxu0 0.0
  %886 = vmatprep.mubr.f32.mxu0 0.0
  %887 = vmatmul.mubr.f32.gmra.mrb[0].mxu0 %v820
  %v888 = vpop.f32.mrb[0].mxu0
  %v889 = vadd.f32 %v814, %v888
  %v890 = vpop.f32.mrb[0].mxu0
  %891 = vdwg.mxu0
  %vm892 = vcmask 523264
  %893 = vst.msk [vmem:[%s3] sm:$0xff] %vm892, %v889
  // Predicated region
  $region14: #{_lambda_.1} parent=0 // pred_check
    _
  $region15: #{_lambda_.1} parent=0 // pred_check_branch
    %895 = sbr.rel (0) target = $region17
  $region16: #{_lambda_.1} parent=0 // pred_region
    _
  $region17: #{_lambda_.1} parent=0 // pred_fallthru
    _
  // Predicated region
  $region18: #{_lambda_.1} parent=0 // pred_check
    _
  $region19: #{_lambda_.1} parent=0 // pred_check_branch
    %897 = sbr.rel (0) target = $region21
  $region20: #{_lambda_.1} parent=0 // pred_region
    _
  $region21: #{_lambda_.1} parent=0 // pred_fallthru
    _

</llo_original>
